<compile_context>
chip_gen: v6e
topology: v6e:2x2x1
jax: 0.10.0
libtpu: 0.0.40
codegen_flags: <defaults>
</compile_context>

<pallas_src>
import functools

import jax
import jax.numpy as jnp
from jax.experimental import pallas as pl
from jax.experimental.pallas import tpu as pltpu


_LANE = 128
_SUBLANE = 16  # multiple of both f32 (8) and bf16 (16) sublane tiling


def _round_up(x, m):
    return (x + m - 1) // m * m


def _num_tensorcores():
    """TensorCores per JAX device: 2 on v7x/v4/v5p (megacore), 1 on v5e/v6e."""
    try:
        kind = jax.devices()[0].device_kind.lower()
    except Exception:
        return 1
    if any(tag in kind for tag in ("lite", "v5e", "v6e")):
        return 1
    if any(tag in kind for tag in ("v7", "v4", "v5p")):
        return 2
    return 1  # conservative default: never add pointless grid steps


def _pick_batch_tile(batch, num_cores):
    """Largest row tile that still gives every TensorCore a tile, capped at
    2048 rows (per-tile VMEM stays ~MiB-scale, far under every chip's budget)."""
    b = _round_up(batch, _SUBLANE)
    per_core = _round_up(pl.cdiv(b, max(1, num_cores)), _SUBLANE)
    return max(_SUBLANE, min(2048, per_core))


def actor_mlp_kernel(x_ref, w1_ref, b1_ref, w2_ref, b2_ref, w3_ref, b3_ref, o_ref):
    """Whole MLP forward for one batch tile, entirely in VMEM.

    x_ref : (TB, state_dim)          compute dtype (bf16 by default)
    wN    : (in_dim, out_dim)        compute dtype (upcast to f32 for layers 2/3)
    bN    : (1, out_dim)             float32
    o_ref : (TB, out_lanes)          out dtype
    """
    # Layer 1: bf16 x bf16 on the MXU, f32 accumulate; bias + ReLU in f32.
    h = jnp.dot(x_ref[...], w1_ref[...], preferred_element_type=jnp.float32)
    h = jnp.maximum(h + b1_ref[...], 0.0)

    # Layers 2/3: keep activations in f32 (not MXU-bound, so this is free and
    # avoids two rounding steps).  Weights are upcast from the streamed dtype.
    h = jnp.dot(h, w2_ref[...].astype(jnp.float32),
                preferred_element_type=jnp.float32)
    h = jnp.maximum(h + b2_ref[...], 0.0)

    # Layer 3: Linear (build_mlp drops the trailing ReLU), then tanh.
    h = jnp.dot(h, w3_ref[...].astype(jnp.float32),
                preferred_element_type=jnp.float32)
    o_ref[...] = jnp.tanh(h + b3_ref[...]).astype(o_ref.dtype)


def _prep_last_layer(w3, b3, action_dim, pad_output_lanes):
    """Optionally pad the action axis up to 128 lanes (lane-dense stores)."""
    a_pad = _round_up(action_dim, _LANE) if pad_output_lanes else action_dim
    if a_pad != action_dim:
        pad = [(0, 0)] * (w3.ndim - 1) + [(0, a_pad - action_dim)]
        w3 = jnp.pad(w3, pad)
        b3 = jnp.pad(b3, pad)
    return w3, b3, a_pad


def _cost_estimate(rows, dims, arrays, out_rows, out_cols, out_dtype):
    flops = 2 * rows * sum(dims[i] * dims[i + 1] for i in range(len(dims) - 1))
    bytes_accessed = sum(a.size * a.dtype.itemsize for a in arrays)
    bytes_accessed += out_rows * out_cols * jnp.dtype(out_dtype).itemsize
    return pl.CostEstimate(flops=flops,
                           transcendentals=rows * dims[-1],
                           bytes_accessed=bytes_accessed)


def actor_forward(state, params, *, batch_tile=None, compute_dtype=jnp.bfloat16,
                  out_dtype=None, pad_output_lanes=False):
    """Actor forward pass (single actor) with a Pallas TPU kernel.

    state  : (B, state_dim)
    params : dict with w1 (S,H1), b1 (1,H1), w2 (H1,H2), b2 (1,H2),
             w3 (H2,A), b3 (1,A).  Weights stored transposed vs torch: y = x@W + b.
    """
    out_dtype = state.dtype if out_dtype is None else out_dtype
    B, state_dim = state.shape
    h1 = params["w1"].shape[1]
    h2 = params["w2"].shape[1]
    action_dim = params["w3"].shape[1]

    ncores = _num_tensorcores()
    tb = _pick_batch_tile(B, ncores) if batch_tile is None else int(batch_tile)
    assert tb > 0 and tb % _SUBLANE == 0, \
        "batch_tile must be a positive multiple of 16"

    # Pad the batch so the grid tiles it exactly; padded rows are sliced away.
    b_pad = _round_up(B, tb)
    if b_pad != B:
        state = jnp.pad(state, ((0, b_pad - B), (0, 0)))

    w3, b3, a_pad = _prep_last_layer(params["w3"], params["b3"],
                                     action_dim, pad_output_lanes)

    # Stream activations / weights in the (narrow) compute dtype; biases and
    # all accumulation stay f32.
    x = state.astype(compute_dtype)
    w1 = params["w1"].astype(compute_dtype)
    w2 = params["w2"].astype(compute_dtype)
    w3 = w3.astype(compute_dtype)
    b1 = params["b1"].astype(jnp.float32)
    b2 = params["b2"].astype(jnp.float32)
    b3 = b3.astype(jnp.float32)

    full = lambda i: (0, 0)  # constant block index -> fetched once, VMEM-resident
    operands = (x, w1, b1, w2, b2, w3, b3)

    out = pl.pallas_call(
        actor_mlp_kernel,
        out_shape=jax.ShapeDtypeStruct((b_pad, a_pad), out_dtype),
        grid=(b_pad // tb,),
        in_specs=[
            pl.BlockSpec((tb, state_dim), lambda i: (i, 0)),
            pl.BlockSpec(w1.shape, full),
            pl.BlockSpec(b1.shape, full),
            pl.BlockSpec(w2.shape, full),
            pl.BlockSpec(b2.shape, full),
            pl.BlockSpec(w3.shape, full),
            pl.BlockSpec(b3.shape, full),
        ],
        out_specs=pl.BlockSpec((tb, a_pad), lambda i: (i, 0)),
        compiler_params=pltpu.CompilerParams(
            dimension_semantics=("parallel",),
        ),
        cost_estimate=_cost_estimate(
            b_pad, (state_dim, h1, h2, a_pad), operands, b_pad, a_pad, out_dtype),
    )(*operands)

    return out[:B, :action_dim]


def actor_population_forward(states, params, *, batch_tile=None,
                             compute_dtype=jnp.bfloat16, out_dtype=None,
                             pad_output_lanes=False):
    """ERL population evaluation: N actors in ONE pallas_call.

    states : (N, B, state_dim)    per-actor rollout states
    params : dict of stacked arrays: w1 (N,S,H1), b1 (N,1,H1), w2 (N,H1,H2),
             b2 (N,1,H2), w3 (N,H2,A), b3 (N,1,A)
    """
    out_dtype = states.dtype if out_dtype is None else out_dtype
    n_actor, B, state_dim = states.shape
    h1 = params["w1"].shape[-1]
    h2 = params["w2"].shape[-1]
    action_dim = params["w3"].shape[-1]

    ncores = _num_tensorcores()
    tb = _pick_batch_tile(B, ncores) if batch_tile is None else int(batch_tile)
    assert tb > 0 and tb % _SUBLANE == 0

    b_pad = _round_up(B, tb)
    if b_pad != B:
        states = jnp.pad(states, ((0, 0), (0, b_pad - B), (0, 0)))

    w3, b3, a_pad = _prep_last_layer(params["w3"], params["b3"],
                                     action_dim, pad_output_lanes)

    x = states.astype(compute_dtype)
    w1 = params["w1"].astype(compute_dtype)
    w2 = params["w2"].astype(compute_dtype)
    w3 = w3.astype(compute_dtype)
    b1 = params["b1"].astype(jnp.float32)
    b2 = params["b2"].astype(jnp.float32)
    b3 = b3.astype(jnp.float32)

    # Per-actor weights: leading axis is Squeezed (None) so the same 2-D kernel
    # body is reused; weight blocks only change when the actor index changes,
    # so their DMAs overlap the previous actor's compute.
    def wspec(arr):
        return pl.BlockSpec((None,) + arr.shape[1:], lambda a, i: (a, 0, 0))

    operands = (x, w1, b1, w2, b2, w3, b3)

    out = pl.pallas_call(
        actor_mlp_kernel,
        out_shape=jax.ShapeDtypeStruct((n_actor, b_pad, a_pad), out_dtype),
        grid=(n_actor, b_pad // tb),
        in_specs=[
            pl.BlockSpec((None, tb, state_dim), lambda a, i: (a, i, 0)),
            wspec(w1), wspec(b1), wspec(w2), wspec(b2), wspec(w3), wspec(b3),
        ],
        out_specs=pl.BlockSpec((None, tb, a_pad), lambda a, i: (a, i, 0)),
        compiler_params=pltpu.CompilerParams(
            dimension_semantics=("parallel", "parallel"),
        ),
        cost_estimate=_cost_estimate(
            n_actor * b_pad, (state_dim, h1, h2, a_pad), operands,
            n_actor * b_pad, a_pad, out_dtype),
    )(*operands)

    return out[:, :B, :action_dim]


def init_actor_params(key, state_dim, net_dims, action_dim, dtype=jnp.float32):
    """torch.nn.Linear-style init: uniform(+-1/sqrt(fan_in)) for weight & bias.
    Weights stored as (in_dim, out_dim)."""
    dims = [state_dim, *net_dims, action_dim]
    params = {}
    for li in range(len(dims) - 1):
        fan_in, fan_out = dims[li], dims[li + 1]
        key, kw, kb = jax.random.split(key, 3)
        bound = 1.0 / jnp.sqrt(jnp.asarray(fan_in, dtype))
        params[f"w{li + 1}"] = jax.random.uniform(
            kw, (fan_in, fan_out), dtype, minval=-bound, maxval=bound)
        params[f"b{li + 1}"] = jax.random.uniform(
            kb, (1, fan_out), dtype, minval=-bound, maxval=bound)
    return params


def init_actor_population_params(key, n_actor, state_dim, net_dims, action_dim,
                                 dtype=jnp.float32):
    keys = jax.random.split(key, n_actor)
    per = [init_actor_params(k, state_dim, net_dims, action_dim, dtype)
           for k in keys]
    return {name: jnp.stack([p[name] for p in per]) for name in per[0]}


def actor_forward_ref(state, params, compute_dtype=jnp.float32):
    """Pure-JAX reference mirroring the kernel's precision scheme
    (compute-dtype layer-1 operands, f32 intermediates)."""
    cdt = compute_dtype
    f32 = jnp.float32
    h = jnp.dot(state.astype(cdt), params["w1"].astype(cdt),
                preferred_element_type=f32) + params["b1"].astype(f32)
    h = jnp.maximum(h, 0.0)
    h = jnp.dot(h, params["w2"].astype(cdt).astype(f32),
                preferred_element_type=f32) + params["b2"].astype(f32)
    h = jnp.maximum(h, 0.0)
    h = jnp.dot(h, params["w3"].astype(cdt).astype(f32),
                preferred_element_type=f32) + params["b3"].astype(f32)
    return jnp.tanh(h)


if __name__ == "__main__":
    # Shapes consistent with Actor(net_dims=[32, 32], state_dim=16, action_dim=8).
    batch, state_dim, action_dim = 256, 16, 8
    net_dims = (32, 32)

    key = jax.random.PRNGKey(0)
    key, k_state = jax.random.split(key)
    state = jax.random.normal(k_state, (batch, state_dim), dtype=jnp.float32)
    params = init_actor_params(key, state_dim, net_dims, action_dim)

    # Default path: bf16-streamed inputs/weights, f32 accumulate + intermediates.
    out = jax.block_until_ready(actor_forward(state, params))
    assert out.shape == (batch, action_dim)
    ref_bf16 = actor_forward_ref(state, params, compute_dtype=jnp.bfloat16)
    assert jnp.allclose(out, ref_bf16, atol=2e-3, rtol=2e-3), \
        "Pallas output mismatch vs precision-matched (bf16) reference"

    # Full-f32 path matches the exact reference.
    out_f32 = jax.block_until_ready(
        actor_forward(state, params, compute_dtype=jnp.float32))
    ref_f32 = actor_forward_ref(state, params, compute_dtype=jnp.float32)
    assert jnp.allclose(out_f32, ref_f32, atol=1e-5, rtol=1e-5), \
        "Pallas output mismatch vs f32 reference"

    # Lane-padded writeback variant (kept for per-batch-size benchmarking).
    out_pad = jax.block_until_ready(
        actor_forward(state, params, compute_dtype=jnp.float32,
                      pad_output_lanes=True))
    assert jnp.allclose(out_pad, ref_f32, atol=1e-5, rtol=1e-5), \
        "Pallas (padded-lane) output mismatch vs f32 reference"

    # ERL population eval: all actors in a single pallas_call.
    n_actor, pop_batch = 3, 64
    key, k_pop, k_pop_state = jax.random.split(key, 3)
    pop_params = init_actor_population_params(
        k_pop, n_actor, state_dim, net_dims, action_dim)
    pop_states = jax.random.normal(
        k_pop_state, (n_actor, pop_batch, state_dim), dtype=jnp.float32)
    pop_out = jax.block_until_ready(
        actor_population_forward(pop_states, pop_params))
    assert pop_out.shape == (n_actor, pop_batch, action_dim)
    pop_ref = jax.vmap(functools.partial(
        actor_forward_ref, compute_dtype=jnp.bfloat16))(pop_states, pop_params)
    assert jnp.allclose(pop_out, pop_ref, atol=2e-3, rtol=2e-3), \
        "Pallas population output mismatch vs bf16 reference"

    # TODO(synk): get_action's Normal sampling + clip is stochastic glue, not a
    # hot path; it is intentionally left outside the kernel.
    print("KERNEL_OK")
</pallas_src>

<mosaic_0001>
module attributes {stable_mosaic.version = 11 : i64} {
  func.func @actor_mlp_kernel(%arg0: i32, %arg1: memref<256x16xbf16, #tpu.memory_space<vmem>>, %arg2: memref<16x32xbf16, #tpu.memory_space<vmem>>, %arg3: memref<1x32xf32, #tpu.memory_space<vmem>>, %arg4: memref<32x32xbf16, #tpu.memory_space<vmem>>, %arg5: memref<1x32xf32, #tpu.memory_space<vmem>>, %arg6: memref<32x8xbf16, #tpu.memory_space<vmem>>, %arg7: memref<1x8xf32, #tpu.memory_space<vmem>>, %arg8: memref<256x8xf32, #tpu.memory_space<vmem>>) attributes {dimension_semantics = [#tpu.dimension_semantics<parallel>], iteration_bounds = array<i64: 1>, scalar_prefetch = 0 : i64, scratch_operands = 0 : i64, tpu.core_type = #tpu.core_type<tc>, window_params = [{transform_indices = @transform_0, window_bounds = array<i64: 256, 16>}, {pipeline_mode = #tpu.pipeline_mode<synchronous>, transform_indices = @transform_1, window_bounds = array<i64: 16, 32>}, {pipeline_mode = #tpu.pipeline_mode<synchronous>, transform_indices = @transform_2, window_bounds = array<i64: 1, 32>}, {pipeline_mode = #tpu.pipeline_mode<synchronous>, transform_indices = @transform_3, window_bounds = array<i64: 32, 32>}, {pipeline_mode = #tpu.pipeline_mode<synchronous>, transform_indices = @transform_4, window_bounds = array<i64: 1, 32>}, {pipeline_mode = #tpu.pipeline_mode<synchronous>, transform_indices = @transform_5, window_bounds = array<i64: 32, 8>}, {pipeline_mode = #tpu.pipeline_mode<synchronous>, transform_indices = @transform_6, window_bounds = array<i64: 1, 8>}, {transform_indices = @transform_7, window_bounds = array<i64: 256, 8>}]} {
    %c0 = arith.constant 0 : index
    %c0_0 = arith.constant 0 : index
    %0 = vector.load %arg1[%c0, %c0_0] : memref<256x16xbf16, #tpu.memory_space<vmem>>, vector<256x16xbf16>
    %c0_1 = arith.constant 0 : index
    %c0_2 = arith.constant 0 : index
    %1 = vector.load %arg2[%c0_1, %c0_2] : memref<16x32xbf16, #tpu.memory_space<vmem>>, vector<16x32xbf16>
    %cst = arith.constant dense<0.000000e+00> : vector<256x32xf32>
    %2 = tpu.matmul %0, %1, %cst {dimension_numbers = #tpu.dot_dimension_numbers<[1], [0], [0], [1], [0, 0, 1, 1], [], []>} : vector<256x16xbf16>, vector<16x32xbf16>, vector<256x32xf32> -> vector<256x32xf32>
    %c0_3 = arith.constant 0 : index
    %c0_4 = arith.constant 0 : index
    %3 = vector.load %arg3[%c0_3, %c0_4] : memref<1x32xf32, #tpu.memory_space<vmem>>, vector<1x32xf32>
    %4 = vector.broadcast %3 : vector<1x32xf32> to vector<256x32xf32>
    %5 = arith.addf %2, %4 : vector<256x32xf32>
    %cst_5 = arith.constant 0.000000e+00 : f32
    %6 = vector.broadcast %cst_5 : f32 to vector<256x32xf32>
    %7 = arith.maximumf %5, %6 : vector<256x32xf32>
    %c0_6 = arith.constant 0 : index
    %c0_7 = arith.constant 0 : index
    %8 = vector.load %arg4[%c0_6, %c0_7] : memref<32x32xbf16, #tpu.memory_space<vmem>>, vector<32x32xbf16>
    %9 = arith.extf %8 : vector<32x32xbf16> to vector<32x32xf32>
    %cst_8 = arith.constant dense<0.000000e+00> : vector<256x32xf32>
    %10 = tpu.matmul %7, %9, %cst_8 {dimension_numbers = #tpu.dot_dimension_numbers<[1], [0], [0], [1], [0, 0, 1, 1], [], []>} : vector<256x32xf32>, vector<32x32xf32>, vector<256x32xf32> -> vector<256x32xf32>
    %c0_9 = arith.constant 0 : index
    %c0_10 = arith.constant 0 : index
    %11 = vector.load %arg5[%c0_9, %c0_10] : memref<1x32xf32, #tpu.memory_space<vmem>>, vector<1x32xf32>
    %12 = vector.broadcast %11 : vector<1x32xf32> to vector<256x32xf32>
    %13 = arith.addf %10, %12 : vector<256x32xf32>
    %cst_11 = arith.constant 0.000000e+00 : f32
    %14 = vector.broadcast %cst_11 : f32 to vector<256x32xf32>
    %15 = arith.maximumf %13, %14 : vector<256x32xf32>
    %c0_12 = arith.constant 0 : index
    %c0_13 = arith.constant 0 : index
    %16 = vector.load %arg6[%c0_12, %c0_13] : memref<32x8xbf16, #tpu.memory_space<vmem>>, vector<32x8xbf16>
    %17 = arith.extf %16 : vector<32x8xbf16> to vector<32x8xf32>
    %cst_14 = arith.constant dense<0.000000e+00> : vector<256x8xf32>
    %18 = tpu.matmul %15, %17, %cst_14 {dimension_numbers = #tpu.dot_dimension_numbers<[1], [0], [0], [1], [0, 0, 1, 1], [], []>} : vector<256x32xf32>, vector<32x8xf32>, vector<256x8xf32> -> vector<256x8xf32>
    %c0_15 = arith.constant 0 : index
    %c0_16 = arith.constant 0 : index
    %19 = vector.load %arg7[%c0_15, %c0_16] : memref<1x8xf32, #tpu.memory_space<vmem>>, vector<1x8xf32>
    %20 = vector.broadcast %19 : vector<1x8xf32> to vector<256x8xf32>
    %21 = arith.addf %18, %20 : vector<256x8xf32>
    %22 = math.tanh %21 : vector<256x8xf32>
    %c0_17 = arith.constant 0 : index
    %c0_18 = arith.constant 0 : index
    %23 = vector.load %arg8[%c0_17, %c0_18] : memref<256x8xf32, #tpu.memory_space<vmem>>, vector<256x8xf32>
    tpu.vector_store %arg8[%c0_17, %c0_18], %22 {strides = array<i32>} : memref<256x8xf32, #tpu.memory_space<vmem>>, vector<256x8xf32>,
    return
  }
  func.func @transform_0(%arg0: i32) -> (i32, i32) {
    %c0_i32 = arith.constant 0 : i32
    %c0_i32_0 = arith.constant 0 : i32
    return %arg0, %c0_i32 : i32, i32
  }
  func.func @transform_1(%arg0: i32) -> (i32, i32) {
    %c0_i32 = arith.constant 0 : i32
    %c0_i32_0 = arith.constant 0 : i32
    %c0_i32_1 = arith.constant 0 : i32
    return %c0_i32, %c0_i32_0 : i32, i32
  }
  func.func @transform_2(%arg0: i32) -> (i32, i32) {
    %c0_i32 = arith.constant 0 : i32
    %c0_i32_0 = arith.constant 0 : i32
    %c0_i32_1 = arith.constant 0 : i32
    return %c0_i32, %c0_i32_0 : i32, i32
  }
  func.func @transform_3(%arg0: i32) -> (i32, i32) {
    %c0_i32 = arith.constant 0 : i32
    %c0_i32_0 = arith.constant 0 : i32
    %c0_i32_1 = arith.constant 0 : i32
    return %c0_i32, %c0_i32_0 : i32, i32
  }
  func.func @transform_4(%arg0: i32) -> (i32, i32) {
    %c0_i32 = arith.constant 0 : i32
    %c0_i32_0 = arith.constant 0 : i32
    %c0_i32_1 = arith.constant 0 : i32
    return %c0_i32, %c0_i32_0 : i32, i32
  }
  func.func @transform_5(%arg0: i32) -> (i32, i32) {
    %c0_i32 = arith.constant 0 : i32
    %c0_i32_0 = arith.constant 0 : i32
    %c0_i32_1 = arith.constant 0 : i32
    return %c0_i32, %c0_i32_0 : i32, i32
  }
  func.func @transform_6(%arg0: i32) -> (i32, i32) {
    %c0_i32 = arith.constant 0 : i32
    %c0_i32_0 = arith.constant 0 : i32
    %c0_i32_1 = arith.constant 0 : i32
    return %c0_i32, %c0_i32_0 : i32, i32
  }
  func.func @transform_7(%arg0: i32) -> (i32, i32) {
    %c0_i32 = arith.constant 0 : i32
    %c0_i32_0 = arith.constant 0 : i32
    return %arg0, %c0_i32 : i32, i32
  }
}

</mosaic_0001>

<llo_original>
// kernel: tpu_custom_call.1
$region0: #{tpu_custom_call.1}
  #allocation0 [shape = 'u32[]', space=smem, size = 0x4, offset = 0x4, fixed_abs, tag = 'smem constant byte address 0x4 - core index']
  #allocation1 [shape = 'u32[144,128]{1,0:T(1,128)}', space=vmem, size = 0x12000, scoped, tag = 'internal scratch']
  %s0 = inlined_call_operand.vmem [shape: bf16[256,16], index: 0, kind: input, shape index: {}]
  %s1 = inlined_call_operand.vmem [shape: bf16[16,32], index: 1, kind: input, shape index: {}]
  %s2 = inlined_call_operand.vmem [shape: f32[1,32], index: 2, kind: input, shape index: {}]
  %s3 = inlined_call_operand.vmem [shape: bf16[32,32], index: 3, kind: input, shape index: {}]
  %s4 = inlined_call_operand.vmem [shape: f32[1,32], index: 4, kind: input, shape index: {}]
  %s5 = inlined_call_operand.vmem [shape: bf16[32,8], index: 5, kind: input, shape index: {}]
  %s6 = inlined_call_operand.vmem [shape: f32[1,8], index: 6, kind: input, shape index: {}]
  %s7 = inlined_call_operand.vmem [shape: f32[256,8], index: 7, kind: output, shape index: {}]
  %s8 = sld [smem:[#allocation0]]
  $region38: #{tpu_custom_call.1} parent=0
    _
  %s10 = ssub.s32 1, %s8
  %s11 = scalar_select 0, %s10, %s8
  // Predicated region
  $region2: #{tpu_custom_call.1} parent=0 // pred_check
    _
  $region3: #{tpu_custom_call.1} parent=0 // pred_check_branch
    %13 = sbr.rel (0) target = $region5
  $region4: #{tpu_custom_call.1} parent=0 // pred_region
    _
  $region5: #{tpu_custom_call.1} parent=0 // pred_fallthru
    _
  // Predicated region
  $region6: #{tpu_custom_call.1} parent=0 // pred_check
    _
  $region7: #{tpu_custom_call.1} parent=0 // pred_check_branch
    %15 = sbr.rel (0) target = $region9
  $region8: #{tpu_custom_call.1} parent=0 // pred_region
    _
  $region9: #{tpu_custom_call.1} parent=0 // pred_fallthru
    _
  // Predicated region
  $region10: #{tpu_custom_call.1} parent=0 // pred_check
    _
  $region11: #{tpu_custom_call.1} parent=0 // pred_check_branch
    %17 = sbr.rel (0) target = $region13
  $region12: #{tpu_custom_call.1} parent=0 // pred_region
    _
  $region13: #{tpu_custom_call.1} parent=0 // pred_fallthru
    _
  // Predicated region
  $region14: #{tpu_custom_call.1} parent=0 // pred_check
    _
  $region15: #{tpu_custom_call.1} parent=0 // pred_check_branch
    %19 = sbr.rel (0) target = $region17
  $region16: #{tpu_custom_call.1} parent=0 // pred_region
    _
  $region17: #{tpu_custom_call.1} parent=0 // pred_fallthru
    _
  // Predicated region
  $region18: #{tpu_custom_call.1} parent=0 // pred_check
    _
  $region19: #{tpu_custom_call.1} parent=0 // pred_check_branch
    %21 = sbr.rel (0) target = $region21
  $region20: #{tpu_custom_call.1} parent=0 // pred_region
    _
  $region21: #{tpu_custom_call.1} parent=0 // pred_fallthru
    _
  // Predicated region
  $region22: #{tpu_custom_call.1} parent=0 // pred_check
    _
  $region23: #{tpu_custom_call.1} parent=0 // pred_check_branch
    %23 = sbr.rel (0) target = $region25
  $region24: #{tpu_custom_call.1} parent=0 // pred_region
    _
  $region25: #{tpu_custom_call.1} parent=0 // pred_fallthru
    _
  // Predicated region
  $region26: #{tpu_custom_call.1} parent=0 // pred_check
    _
  $region27: #{tpu_custom_call.1} parent=0 // pred_check_branch
    %25 = sbr.rel (0) target = $region29
  $region28: #{tpu_custom_call.1} parent=0 // pred_region
    _
  $region29: #{tpu_custom_call.1} parent=0 // pred_fallthru
    _
  %v27 = vld [vmem:[%s0] sm:$0xf]
  %v28 = vld [vmem:[%s0 + $0x4] sm:$0xf]
  %v29 = vld [vmem:[%s0 + $0x8] sm:$0xf]
  %v30 = vld [vmem:[%s0 + $0xc] sm:$0xf]
  %v31 = vld [vmem:[%s0 + $0x10] sm:$0xf]
  %v32 = vld [vmem:[%s0 + $0x14] sm:$0xf]
  %v33 = vld [vmem:[%s0 + $0x18] sm:$0xf]
  %v34 = vld [vmem:[%s0 + $0x1c] sm:$0xf]
  %v35 = vld [vmem:[%s0 + $0x20] sm:$0xf]
  %v36 = vld [vmem:[%s0 + $0x24] sm:$0xf]
  %v37 = vld [vmem:[%s0 + $0x28] sm:$0xf]
  %v38 = vld [vmem:[%s0 + $0x2c] sm:$0xf]
  %v39 = vld [vmem:[%s0 + $0x30] sm:$0xf]
  %v40 = vld [vmem:[%s0 + $0x34] sm:$0xf]
  %v41 = vld [vmem:[%s0 + $0x38] sm:$0xf]
  %v42 = vld [vmem:[%s0 + $0x3c] sm:$0xf]
  %v43 = vld [vmem:[%s0 + $0x40] sm:$0xf]
  %v44 = vld [vmem:[%s0 + $0x44] sm:$0xf]
  %v45 = vld [vmem:[%s0 + $0x48] sm:$0xf]
  %v46 = vld [vmem:[%s0 + $0x4c] sm:$0xf]
  %v47 = vld [vmem:[%s0 + $0x50] sm:$0xf]
  %v48 = vld [vmem:[%s0 + $0x54] sm:$0xf]
  %v49 = vld [vmem:[%s0 + $0x58] sm:$0xf]
  %v50 = vld [vmem:[%s0 + $0x5c] sm:$0xf]
  %v51 = vld [vmem:[%s0 + $0x60] sm:$0xf]
  %v52 = vld [vmem:[%s0 + $0x64] sm:$0xf]
  %v53 = vld [vmem:[%s0 + $0x68] sm:$0xf]
  %v54 = vld [vmem:[%s0 + $0x6c] sm:$0xf]
  %v55 = vld [vmem:[%s0 + $0x70] sm:$0xf]
  %v56 = vld [vmem:[%s0 + $0x74] sm:$0xf]
  %v57 = vld [vmem:[%s0 + $0x78] sm:$0xf]
  %v58 = vld [vmem:[%s0 + $0x7c] sm:$0xf]
  %v59 = vld [vmem:[%s1] sm:$0xf]
  %v60 = vld [vmem:[%s1 + $0x4] sm:$0xf]
  %v61 = vld [vmem:[%s2] sm:$0x1]
  %v63 = vlaneseq
  %v64 = vshrl.u32 %v63, 7
  %v65 = vsub.s32 0, %v64
  %v66 = vrot.slane %v61, %v65
  %v100 = vunpack.c.l.b16 %v27
  %v101 = vunpack.c.l.b16 %v28
  %v102 = vunpack.c.l.b16 %v29
  %v103 = vunpack.c.l.b16 %v30
  %v104 = vunpack.c.l.b16 %v31
  %v105 = vunpack.c.l.b16 %v32
  %v106 = vunpack.c.l.b16 %v33
  %v107 = vunpack.c.l.b16 %v34
  %v108 = vunpack.c.l.b16 %v35
  %v109 = vunpack.c.l.b16 %v36
  %v110 = vunpack.c.l.b16 %v37
  %v111 = vunpack.c.l.b16 %v38
  %v112 = vunpack.c.l.b16 %v39
  %v113 = vunpack.c.l.b16 %v40
  %v114 = vunpack.c.l.b16 %v41
  %v115 = vunpack.c.l.b16 %v42
  %v116 = vunpack.c.l.b16 %v43
  %v117 = vunpack.c.l.b16 %v44
  %v118 = vunpack.c.l.b16 %v45
  %v119 = vunpack.c.l.b16 %v46
  %v120 = vunpack.c.l.b16 %v47
  %v121 = vunpack.c.l.b16 %v48
  %v122 = vunpack.c.l.b16 %v49
  %v123 = vunpack.c.l.b16 %v50
  %v124 = vunpack.c.l.b16 %v51
  %v125 = vunpack.c.l.b16 %v52
  %v126 = vunpack.c.l.b16 %v53
  %v127 = vunpack.c.l.b16 %v54
  %v128 = vunpack.c.l.b16 %v55
  %v129 = vunpack.c.l.b16 %v56
  %v130 = vunpack.c.l.b16 %v57
  %v131 = vunpack.c.l.b16 %v58
  %v132 = vpack.c.b16 %v101, %v100
  %v133 = vpack.c.b16 %v103, %v102
  %v134 = vpack.c.b16 %v105, %v104
  %v135 = vpack.c.b16 %v107, %v106
  %v136 = vpack.c.b16 %v109, %v108
  %v137 = vpack.c.b16 %v111, %v110
  %v138 = vpack.c.b16 %v113, %v112
  %v139 = vpack.c.b16 %v115, %v114
  %v140 = vpack.c.b16 %v117, %v116
  %v141 = vpack.c.b16 %v119, %v118
  %v142 = vpack.c.b16 %v121, %v120
  %v143 = vpack.c.b16 %v123, %v122
  %v144 = vpack.c.b16 %v125, %v124
  %v145 = vpack.c.b16 %v127, %v126
  %v146 = vpack.c.b16 %v129, %v128
  %v147 = vpack.c.b16 %v131, %v130
  %v150 = vunpack.c.l.b16 %v59
  %v151 = vunpack.c.l.b16 %v60
  %v152 = vpack.c.b16 %v151, %v150
  %vm154 = vcmask 130048
  %v156 = vsel %vm154, %v132, 0
  %v159 = vsel %vm154, %v133, 0
  %v162 = vsel %vm154, %v134, 0
  %v165 = vsel %vm154, %v135, 0
  %v168 = vsel %vm154, %v136, 0
  %v171 = vsel %vm154, %v137, 0
  %v174 = vsel %vm154, %v138, 0
  %v177 = vsel %vm154, %v139, 0
  %v180 = vsel %vm154, %v140, 0
  %v183 = vsel %vm154, %v141, 0
  %v186 = vsel %vm154, %v142, 0
  %v189 = vsel %vm154, %v143, 0
  %v192 = vsel %vm154, %v144, 0
  %v195 = vsel %vm154, %v145, 0
  %v198 = vsel %vm154, %v146, 0
  %v201 = vsel %vm154, %v147, 0
  %203 = vmatprep.subr.bf16.mxu0 0
  %204 = vmatpush1.bf16.msra.mxu0 0
  %205 = vmatprep.subr.bf16.mxu0 0
  %206 = vmatpush1.bf16.msra.mxu0 0
  %207 = vmatprep.subr.bf16.mxu0 0
  %208 = vmatpush1.bf16.msra.mxu0 0
  %209 = vmatprep.subr.bf16.mxu0 0
  %210 = vmatpush1.bf16.msra.mxu0 0
  %211 = vmatprep.subr.bf16.mxu0 0
  %212 = vmatpush1.bf16.msra.mxu0 0
  %213 = vmatprep.subr.bf16.mxu0 0
  %214 = vmatpush1.bf16.msra.mxu0 0
  %215 = vmatprep.subr.bf16.mxu0 0
  %216 = vmatpush1.bf16.msra.mxu0 0
  %217 = vmatprep.subr.bf16.mxu0 0
  %218 = vmatpush1.bf16.msra.mxu0 %v152
  %219 = vmatprep.subr.bf16.mxu0 0
  %220 = vmatpush2.bf16.msra.mxu0 0
  %221 = vmatprep.subr.bf16.mxu0 0
  %222 = vmatpush2.bf16.msra.mxu0 0
  %223 = vmatprep.subr.bf16.mxu0 0
  %224 = vmatpush2.bf16.msra.mxu0 0
  %225 = vmatprep.subr.bf16.mxu0 0
  %226 = vmatpush2.bf16.msra.mxu0 0
  %227 = vmatprep.subr.bf16.mxu0 0
  %228 = vmatpush2.bf16.msra.mxu0 0
  %229 = vmatprep.subr.bf16.mxu0 0
  %230 = vmatpush2.bf16.msra.mxu0 0
  %231 = vmatprep.subr.bf16.mxu0 0
  %232 = vmatpush2.bf16.msra.mxu0 0
  %233 = vmatprep.subr.bf16.mxu0 0
  %234 = vmatpush2.bf16.msra.mxu0 0
  %235 = vmatprep.mubr.bf16.mxu0 0
  %236 = vmatmul.mubr.bf16.gmra.mxu0 %v156
  %v237 = vpop.f32.mrf.mxu0
  %v238 = vadd.f32 %v66, %v237
  %v239 = vpop.f32.mrf.mxu0
  %v240 = vpop.f32.mrf.mxu0
  %v241 = vadd.f32 %v66, %v240
  %v242 = vpop.f32.mrf.mxu0
  %243 = vmatprep.mubr.bf16.mxu0 0
  %244 = vmatmul.mubr.bf16.gmra.mxu0 %v159
  %v245 = vpop.f32.mrf.mxu0
  %v246 = vadd.f32 %v66, %v245
  %v247 = vpop.f32.mrf.mxu0
  %v248 = vpop.f32.mrf.mxu0
  %v249 = vadd.f32 %v66, %v248
  %v250 = vpop.f32.mrf.mxu0
  %251 = vmatprep.mubr.bf16.mxu0 0
  %252 = vmatmul.mubr.bf16.gmra.mxu0 %v162
  %v253 = vpop.f32.mrf.mxu0
  %v254 = vadd.f32 %v66, %v253
  %v255 = vpop.f32.mrf.mxu0
  %v256 = vpop.f32.mrf.mxu0
  %v257 = vadd.f32 %v66, %v256
  %v258 = vpop.f32.mrf.mxu0
  %259 = vmatprep.mubr.bf16.mxu0 0
  %260 = vmatmul.mubr.bf16.gmra.mxu0 %v165
  %v261 = vpop.f32.mrf.mxu0
  %v262 = vadd.f32 %v66, %v261
  %v263 = vpop.f32.mrf.mxu0
  %v264 = vpop.f32.mrf.mxu0
  %v265 = vadd.f32 %v66, %v264
  %v266 = vpop.f32.mrf.mxu0
  %267 = vmatprep.mubr.bf16.mxu0 0
  %268 = vmatmul.mubr.bf16.gmra.mxu0 %v168
  %v269 = vpop.f32.mrf.mxu0
  %v270 = vadd.f32 %v66, %v269
  %v271 = vpop.f32.mrf.mxu0
  %v272 = vpop.f32.mrf.mxu0
  %v273 = vadd.f32 %v66, %v272
  %v274 = vpop.f32.mrf.mxu0
  %275 = vmatprep.mubr.bf16.mxu0 0
  %276 = vmatmul.mubr.bf16.gmra.mxu0 %v171
  %v277 = vpop.f32.mrf.mxu0
  %v278 = vadd.f32 %v66, %v277
  %v279 = vpop.f32.mrf.mxu0
  %v280 = vpop.f32.mrf.mxu0
  %v281 = vadd.f32 %v66, %v280
  %v282 = vpop.f32.mrf.mxu0
  %283 = vmatprep.mubr.bf16.mxu0 0
  %284 = vmatmul.mubr.bf16.gmra.mxu0 %v174
  %v285 = vpop.f32.mrf.mxu0
  %v286 = vadd.f32 %v66, %v285
  %v287 = vpop.f32.mrf.mxu0
  %v288 = vpop.f32.mrf.mxu0
  %v289 = vadd.f32 %v66, %v288
  %v290 = vpop.f32.mrf.mxu0
  %291 = vmatprep.mubr.bf16.mxu0 0
  %292 = vmatmul.mubr.bf16.gmra.mxu0 %v177
  %v293 = vpop.f32.mrf.mxu0
  %v294 = vadd.f32 %v66, %v293
  %v295 = vpop.f32.mrf.mxu0
  %v296 = vpop.f32.mrf.mxu0
  %v297 = vadd.f32 %v66, %v296
  %v298 = vpop.f32.mrf.mxu0
  %299 = vmatprep.mubr.bf16.mxu0 0
  %300 = vmatmul.mubr.bf16.gmra.mxu0 %v180
  %v301 = vpop.f32.mrf.mxu0
  %v302 = vadd.f32 %v66, %v301
  %v303 = vpop.f32.mrf.mxu0
  %v304 = vpop.f32.mrf.mxu0
  %v305 = vadd.f32 %v66, %v304
  %v306 = vpop.f32.mrf.mxu0
  %307 = vmatprep.mubr.bf16.mxu0 0
  %308 = vmatmul.mubr.bf16.gmra.mxu0 %v183
  %v309 = vpop.f32.mrf.mxu0
  %v310 = vadd.f32 %v66, %v309
  %v311 = vpop.f32.mrf.mxu0
  %v312 = vpop.f32.mrf.mxu0
  %v313 = vadd.f32 %v66, %v312
  %v314 = vpop.f32.mrf.mxu0
  %315 = vmatprep.mubr.bf16.mxu0 0
  %316 = vmatmul.mubr.bf16.gmra.mxu0 %v186
  %v317 = vpop.f32.mrf.mxu0
  %v318 = vadd.f32 %v66, %v317
  %v319 = vpop.f32.mrf.mxu0
  %v320 = vpop.f32.mrf.mxu0
  %v321 = vadd.f32 %v66, %v320
  %v322 = vpop.f32.mrf.mxu0
  %323 = vmatprep.mubr.bf16.mxu0 0
  %324 = vmatmul.mubr.bf16.gmra.mxu0 %v189
  %v325 = vpop.f32.mrf.mxu0
  %v326 = vadd.f32 %v66, %v325
  %v327 = vpop.f32.mrf.mxu0
  %v328 = vpop.f32.mrf.mxu0
  %v329 = vadd.f32 %v66, %v328
  %v330 = vpop.f32.mrf.mxu0
  %331 = vmatprep.mubr.bf16.mxu0 0
  %332 = vmatmul.mubr.bf16.gmra.mxu0 %v192
  %v333 = vpop.f32.mrf.mxu0
  %v334 = vadd.f32 %v66, %v333
  %v335 = vpop.f32.mrf.mxu0
  %v336 = vpop.f32.mrf.mxu0
  %v337 = vadd.f32 %v66, %v336
  %v338 = vpop.f32.mrf.mxu0
  %339 = vmatprep.mubr.bf16.mxu0 0
  %340 = vmatmul.mubr.bf16.gmra.mxu0 %v195
  %v341 = vpop.f32.mrf.mxu0
  %v342 = vadd.f32 %v66, %v341
  %v343 = vpop.f32.mrf.mxu0
  %v344 = vpop.f32.mrf.mxu0
  %v345 = vadd.f32 %v66, %v344
  %v346 = vpop.f32.mrf.mxu0
  %347 = vmatprep.mubr.bf16.mxu0 0
  %348 = vmatmul.mubr.bf16.gmra.mxu0 %v198
  %v349 = vpop.f32.mrf.mxu0
  %v350 = vadd.f32 %v66, %v349
  %v351 = vpop.f32.mrf.mxu0
  %v352 = vpop.f32.mrf.mxu0
  %v353 = vadd.f32 %v66, %v352
  %v354 = vpop.f32.mrf.mxu0
  %355 = vmatprep.mubr.bf16.mxu0 0
  %356 = vmatmul.mubr.bf16.gmra.mxu0 %v201
  %v357 = vpop.f32.mrf.mxu0
  %v358 = vadd.f32 %v66, %v357
  %v359 = vpop.f32.mrf.mxu0
  %v360 = vpop.f32.mrf.mxu0
  %v361 = vadd.f32 %v66, %v360
  %v362 = vpop.f32.mrf.mxu0
  %363 = vdwg.mxu0
  %v364 = vmax.f32 %v238, 0.0
  %v365 = vmax.f32 %v241, 0.0
  %v366 = vmax.f32 %v246, 0.0
  %v367 = vmax.f32 %v249, 0.0
  %v368 = vmax.f32 %v254, 0.0
  %v369 = vmax.f32 %v257, 0.0
  %v370 = vmax.f32 %v262, 0.0
  %v371 = vmax.f32 %v265, 0.0
  %v372 = vmax.f32 %v270, 0.0
  %v373 = vmax.f32 %v273, 0.0
  %v374 = vmax.f32 %v278, 0.0
  %v375 = vmax.f32 %v281, 0.0
  %v376 = vmax.f32 %v286, 0.0
  %v377 = vmax.f32 %v289, 0.0
  %v378 = vmax.f32 %v294, 0.0
  %v379 = vmax.f32 %v297, 0.0
  %v380 = vmax.f32 %v302, 0.0
  %v381 = vmax.f32 %v305, 0.0
  %v382 = vmax.f32 %v310, 0.0
  %v383 = vmax.f32 %v313, 0.0
  %v384 = vmax.f32 %v318, 0.0
  %v385 = vmax.f32 %v321, 0.0
  %v386 = vmax.f32 %v326, 0.0
  %v387 = vmax.f32 %v329, 0.0
  %v388 = vmax.f32 %v334, 0.0
  %v389 = vmax.f32 %v337, 0.0
  %v390 = vmax.f32 %v342, 0.0
  %v391 = vmax.f32 %v345, 0.0
  %v392 = vmax.f32 %v350, 0.0
  %v393 = vmax.f32 %v353, 0.0
  %v394 = vmax.f32 %v358, 0.0
  %v395 = vmax.f32 %v361, 0.0
  %v396 = vld [vmem:[%s3] sm:$0xf]
  %v397 = vld [vmem:[%s3 + $0x4] sm:$0xf]
  %v398 = vld [vmem:[%s3 + $0x8] sm:$0xf]
  %v399 = vld [vmem:[%s3 + $0xc] sm:$0xf]
  %v400 = vunpack.c.l.bf16 %v396
  %v401 = vunpack.c.l.bf16 %v397
  %v402 = vunpack.c.l.bf16 %v398
  %v403 = vunpack.c.l.bf16 %v399
  %v404 = vld [vmem:[%s4] sm:$0x1]
  %v406 = vlaneseq
  %v407 = vshrl.u32 %v406, 7
  %v408 = vsub.s32 0, %v407
  %v409 = vrot.slane %v404, %v408
  %vm411 = vcmask 261120
  %v413 = vsel %vm411, %v364, 0
  %v416 = vsel %vm411, %v365, 0
  %v419 = vsel %vm411, %v366, 0
  %v422 = vsel %vm411, %v367, 0
  %v425 = vsel %vm411, %v368, 0
  %v428 = vsel %vm411, %v369, 0
  %v431 = vsel %vm411, %v370, 0
  %v434 = vsel %vm411, %v371, 0
  %v437 = vsel %vm411, %v372, 0
  %v440 = vsel %vm411, %v373, 0
  %v443 = vsel %vm411, %v374, 0
  %v446 = vsel %vm411, %v375, 0
  %v449 = vsel %vm411, %v376, 0
  %v452 = vsel %vm411, %v377, 0
  %v455 = vsel %vm411, %v378, 0
  %v458 = vsel %vm411, %v379, 0
  %v461 = vsel %vm411, %v380, 0
  %v464 = vsel %vm411, %v381, 0
  %v467 = vsel %vm411, %v382, 0
  %v470 = vsel %vm411, %v383, 0
  %v473 = vsel %vm411, %v384, 0
  %v476 = vsel %vm411, %v385, 0
  %v479 = vsel %vm411, %v386, 0
  %v482 = vsel %vm411, %v387, 0
  %v485 = vsel %vm411, %v388, 0
  %v488 = vsel %vm411, %v389, 0
  %v491 = vsel %vm411, %v390, 0
  %v494 = vsel %vm411, %v391, 0
  %v497 = vsel %vm411, %v392, 0
  %v500 = vsel %vm411, %v393, 0
  %v503 = vsel %vm411, %v394, 0
  %v506 = vsel %vm411, %v395, 0
  %508 = vmatprep.subr.mxu0 0.0
  %509 = vmatpush1.msra.mxu0 0.0
  %510 = vmatprep.subr.mxu0 0.0
  %511 = vmatpush1.msra.mxu0 0.0
  %512 = vmatprep.subr.mxu0 0.0
  %513 = vmatpush1.msra.mxu0 0.0
  %514 = vmatprep.subr.mxu0 0.0
  %515 = vmatpush1.msra.mxu0 0.0
  %516 = vmatprep.subr.mxu0 0.0
  %517 = vmatpush1.msra.mxu0 0.0
  %518 = vmatprep.subr.mxu0 0.0
  %519 = vmatpush1.msra.mxu0 0.0
  %520 = vmatprep.subr.mxu0 0.0
  %521 = vmatpush1.msra.mxu0 0.0
  %522 = vmatprep.subr.mxu0 0.0
  %523 = vmatpush1.msra.mxu0 0.0
  %524 = vmatprep.subr.mxu0 0.0
  %525 = vmatpush1.msra.mxu0 0.0
  %526 = vmatprep.subr.mxu0 0.0
  %527 = vmatpush1.msra.mxu0 0.0
  %528 = vmatprep.subr.mxu0 0.0
  %529 = vmatpush1.msra.mxu0 0.0
  %530 = vmatprep.subr.mxu0 0.0
  %531 = vmatpush1.msra.mxu0 0.0
  %532 = vmatprep.subr.mxu0 0.0
  %533 = vmatpush1.msra.mxu0 %v403
  %534 = vmatprep.subr.mxu0 0.0
  %535 = vmatpush1.msra.mxu0 %v402
  %536 = vmatprep.subr.mxu0 0.0
  %537 = vmatpush1.msra.mxu0 %v401
  %538 = vmatprep.subr.mxu0 0.0
  %539 = vmatpush1.msra.mxu0 %v400
  %540 = vmatprep.subr.mxu0 0.0
  %541 = vmatpush2.msra.mxu0 0.0
  %542 = vmatprep.subr.mxu0 0.0
  %543 = vmatpush2.msra.mxu0 0.0
  %544 = vmatprep.subr.mxu0 0.0
  %545 = vmatpush2.msra.mxu0 0.0
  %546 = vmatprep.subr.mxu0 0.0
  %547 = vmatpush2.msra.mxu0 0.0
  %548 = vmatprep.subr.mxu0 0.0
  %549 = vmatpush2.msra.mxu0 0.0
  %550 = vmatprep.subr.mxu0 0.0
  %551 = vmatpush2.msra.mxu0 0.0
  %552 = vmatprep.subr.mxu0 0.0
  %553 = vmatpush2.msra.mxu0 0.0
  %554 = vmatprep.subr.mxu0 0.0
  %555 = vmatpush2.msra.mxu0 0.0
  %556 = vmatprep.subr.mxu0 0.0
  %557 = vmatpush2.msra.mxu0 0.0
  %558 = vmatprep.subr.mxu0 0.0
  %559 = vmatpush2.msra.mxu0 0.0
  %560 = vmatprep.subr.mxu0 0.0
  %561 = vmatpush2.msra.mxu0 0.0
  %562 = vmatprep.subr.mxu0 0.0
  %563 = vmatpush2.msra.mxu0 0.0
  %564 = vmatprep.subr.mxu0 0.0
  %565 = vmatpush2.msra.mxu0 0.0
  %566 = vmatprep.subr.mxu0 0.0
  %567 = vmatpush2.msra.mxu0 0.0
  %568 = vmatprep.subr.mxu0 0.0
  %569 = vmatpush2.msra.mxu0 0.0
  %570 = vmatprep.subr.mxu0 0.0
  %571 = vmatpush2.msra.mxu0 0.0
  %572 = vmatprep.mubr.f32.mxu0 0.0
  %573 = vmatmul.mubr.f32.gmra.mxu0 %v413
  %v574 = vpop.f32.mrf.mxu0
  %v575 = vadd.f32 %v409, %v574
  %v576 = vpop.f32.mrf.mxu0
  %577 = vmatprep.mubr.f32.mxu0 0.0
  %578 = vmatmul.mubr.f32.gmra.mxu0 %v416
  %v579 = vpop.f32.mrf.mxu0
  %v580 = vadd.f32 %v409, %v579
  %v581 = vpop.f32.mrf.mxu0
  %582 = vmatprep.mubr.f32.mxu0 0.0
  %583 = vmatmul.mubr.f32.gmra.mxu0 %v419
  %v584 = vpop.f32.mrf.mxu0
  %v585 = vadd.f32 %v409, %v584
  %v586 = vpop.f32.mrf.mxu0
  %587 = vmatprep.mubr.f32.mxu0 0.0
  %588 = vmatmul.mubr.f32.gmra.mxu0 %v422
  %v589 = vpop.f32.mrf.mxu0
  %v590 = vadd.f32 %v409, %v589
  %v591 = vpop.f32.mrf.mxu0
  %592 = vmatprep.mubr.f32.mxu0 0.0
  %593 = vmatmul.mubr.f32.gmra.mxu0 %v425
  %v594 = vpop.f32.mrf.mxu0
  %v595 = vadd.f32 %v409, %v594
  %v596 = vpop.f32.mrf.mxu0
  %597 = vmatprep.mubr.f32.mxu0 0.0
  %598 = vmatmul.mubr.f32.gmra.mxu0 %v428
  %v599 = vpop.f32.mrf.mxu0
  %v600 = vadd.f32 %v409, %v599
  %v601 = vpop.f32.mrf.mxu0
  %602 = vmatprep.mubr.f32.mxu0 0.0
  %603 = vmatmul.mubr.f32.gmra.mxu0 %v431
  %v604 = vpop.f32.mrf.mxu0
  %v605 = vadd.f32 %v409, %v604
  %v606 = vpop.f32.mrf.mxu0
  %607 = vmatprep.mubr.f32.mxu0 0.0
  %608 = vmatmul.mubr.f32.gmra.mxu0 %v434
  %v609 = vpop.f32.mrf.mxu0
  %v610 = vadd.f32 %v409, %v609
  %v611 = vpop.f32.mrf.mxu0
  %612 = vmatprep.mubr.f32.mxu0 0.0
  %613 = vmatmul.mubr.f32.gmra.mxu0 %v437
  %v614 = vpop.f32.mrf.mxu0
  %v615 = vadd.f32 %v409, %v614
  %v616 = vpop.f32.mrf.mxu0
  %617 = vmatprep.mubr.f32.mxu0 0.0
  %618 = vmatmul.mubr.f32.gmra.mxu0 %v440
  %v619 = vpop.f32.mrf.mxu0
  %v620 = vadd.f32 %v409, %v619
  %v621 = vpop.f32.mrf.mxu0
  %622 = vmatprep.mubr.f32.mxu0 0.0
  %623 = vmatmul.mubr.f32.gmra.mxu0 %v443
  %v624 = vpop.f32.mrf.mxu0
  %v625 = vadd.f32 %v409, %v624
  %v626 = vpop.f32.mrf.mxu0
  %627 = vmatprep.mubr.f32.mxu0 0.0
  %628 = vmatmul.mubr.f32.gmra.mxu0 %v446
  %v629 = vpop.f32.mrf.mxu0
  %v630 = vadd.f32 %v409, %v629
  %v631 = vpop.f32.mrf.mxu0
  %632 = vmatprep.mubr.f32.mxu0 0.0
  %633 = vmatmul.mubr.f32.gmra.mxu0 %v449
  %v634 = vpop.f32.mrf.mxu0
  %v635 = vadd.f32 %v409, %v634
  %v636 = vpop.f32.mrf.mxu0
  %637 = vmatprep.mubr.f32.mxu0 0.0
  %638 = vmatmul.mubr.f32.gmra.mxu0 %v452
  %v639 = vpop.f32.mrf.mxu0
  %v640 = vadd.f32 %v409, %v639
  %v641 = vpop.f32.mrf.mxu0
  %642 = vmatprep.mubr.f32.mxu0 0.0
  %643 = vmatmul.mubr.f32.gmra.mxu0 %v455
  %v644 = vpop.f32.mrf.mxu0
  %v645 = vadd.f32 %v409, %v644
  %v646 = vpop.f32.mrf.mxu0
  %647 = vmatprep.mubr.f32.mxu0 0.0
  %648 = vmatmul.mubr.f32.gmra.mxu0 %v458
  %v649 = vpop.f32.mrf.mxu0
  %v650 = vadd.f32 %v409, %v649
  %v651 = vpop.f32.mrf.mxu0
  %652 = vmatprep.mubr.f32.mxu0 0.0
  %653 = vmatmul.mubr.f32.gmra.mxu0 %v461
  %v654 = vpop.f32.mrf.mxu0
  %v655 = vadd.f32 %v409, %v654
  %v656 = vpop.f32.mrf.mxu0
  %657 = vmatprep.mubr.f32.mxu0 0.0
  %658 = vmatmul.mubr.f32.gmra.mxu0 %v464
  %v659 = vpop.f32.mrf.mxu0
  %v660 = vadd.f32 %v409, %v659
  %v661 = vpop.f32.mrf.mxu0
  %662 = vmatprep.mubr.f32.mxu0 0.0
  %663 = vmatmul.mubr.f32.gmra.mxu0 %v467
  %v664 = vpop.f32.mrf.mxu0
  %v665 = vadd.f32 %v409, %v664
  %v666 = vpop.f32.mrf.mxu0
  %667 = vmatprep.mubr.f32.mxu0 0.0
  %668 = vmatmul.mubr.f32.gmra.mxu0 %v470
  %v669 = vpop.f32.mrf.mxu0
  %v670 = vadd.f32 %v409, %v669
  %v671 = vpop.f32.mrf.mxu0
  %672 = vmatprep.mubr.f32.mxu0 0.0
  %673 = vmatmul.mubr.f32.gmra.mxu0 %v473
  %v674 = vpop.f32.mrf.mxu0
  %v675 = vadd.f32 %v409, %v674
  %v676 = vpop.f32.mrf.mxu0
  %677 = vmatprep.mubr.f32.mxu0 0.0
  %678 = vmatmul.mubr.f32.gmra.mxu0 %v476
  %v679 = vpop.f32.mrf.mxu0
  %v680 = vadd.f32 %v409, %v679
  %v681 = vpop.f32.mrf.mxu0
  %682 = vmatprep.mubr.f32.mxu0 0.0
  %683 = vmatmul.mubr.f32.gmra.mxu0 %v479
  %v684 = vpop.f32.mrf.mxu0
  %v685 = vadd.f32 %v409, %v684
  %v686 = vpop.f32.mrf.mxu0
  %687 = vmatprep.mubr.f32.mxu0 0.0
  %688 = vmatmul.mubr.f32.gmra.mxu0 %v482
  %v689 = vpop.f32.mrf.mxu0
  %v690 = vadd.f32 %v409, %v689
  %v691 = vpop.f32.mrf.mxu0
  %692 = vmatprep.mubr.f32.mxu0 0.0
  %693 = vmatmul.mubr.f32.gmra.mxu0 %v485
  %v694 = vpop.f32.mrf.mxu0
  %v695 = vadd.f32 %v409, %v694
  %v696 = vpop.f32.mrf.mxu0
  %697 = vmatprep.mubr.f32.mxu0 0.0
  %698 = vmatmul.mubr.f32.gmra.mxu0 %v488
  %v699 = vpop.f32.mrf.mxu0
  %v700 = vadd.f32 %v409, %v699
  %v701 = vpop.f32.mrf.mxu0
  %702 = vmatprep.mubr.f32.mxu0 0.0
  %703 = vmatmul.mubr.f32.gmra.mxu0 %v491
  %v704 = vpop.f32.mrf.mxu0
  %v705 = vadd.f32 %v409, %v704
  %v706 = vpop.f32.mrf.mxu0
  %707 = vmatprep.mubr.f32.mxu0 0.0
  %708 = vmatmul.mubr.f32.gmra.mxu0 %v494
  %v709 = vpop.f32.mrf.mxu0
  %v710 = vadd.f32 %v409, %v709
  %v711 = vpop.f32.mrf.mxu0
  %712 = vmatprep.mubr.f32.mxu0 0.0
  %713 = vmatmul.mubr.f32.gmra.mxu0 %v497
  %v714 = vpop.f32.mrf.mxu0
  %v715 = vadd.f32 %v409, %v714
  %v716 = vpop.f32.mrf.mxu0
  %717 = vmatprep.mubr.f32.mxu0 0.0
  %718 = vmatmul.mubr.f32.gmra.mxu0 %v500
  %v719 = vpop.f32.mrf.mxu0
  %v720 = vadd.f32 %v409, %v719
  %v721 = vpop.f32.mrf.mxu0
  %722 = vmatprep.mubr.f32.mxu0 0.0
  %723 = vmatmul.mubr.f32.gmra.mxu0 %v503
  %v724 = vpop.f32.mrf.mxu0
  %v725 = vadd.f32 %v409, %v724
  %v726 = vpop.f32.mrf.mxu0
  %727 = vmatprep.mubr.f32.mxu0 0.0
  %728 = vmatmul.mubr.f32.gmra.mxu0 %v506
  %v729 = vpop.f32.mrf.mxu0
  %v730 = vadd.f32 %v409, %v729
  %v731 = vpop.f32.mrf.mxu0
  %732 = vdwg.mxu0
  %v733 = vmax.f32 %v575, 0.0
  %v734 = vmax.f32 %v580, 0.0
  %v735 = vmax.f32 %v585, 0.0
  %v736 = vmax.f32 %v590, 0.0
  %v737 = vmax.f32 %v595, 0.0
  %v738 = vmax.f32 %v600, 0.0
  %v739 = vmax.f32 %v605, 0.0
  %v740 = vmax.f32 %v610, 0.0
  %v741 = vmax.f32 %v615, 0.0
  %v742 = vmax.f32 %v620, 0.0
  %v743 = vmax.f32 %v625, 0.0
  %v744 = vmax.f32 %v630, 0.0
  %v745 = vmax.f32 %v635, 0.0
  %v746 = vmax.f32 %v640, 0.0
  %v747 = vmax.f32 %v645, 0.0
  %v748 = vmax.f32 %v650, 0.0
  %v749 = vmax.f32 %v655, 0.0
  %v750 = vmax.f32 %v660, 0.0
  %v751 = vmax.f32 %v665, 0.0
  %v752 = vmax.f32 %v670, 0.0
  %v753 = vmax.f32 %v675, 0.0
  %v754 = vmax.f32 %v680, 0.0
  %v755 = vmax.f32 %v685, 0.0
  %v756 = vmax.f32 %v690, 0.0
  %v757 = vmax.f32 %v695, 0.0
  %v758 = vmax.f32 %v700, 0.0
  %v759 = vmax.f32 %v705, 0.0
  %v760 = vmax.f32 %v710, 0.0
  %v761 = vmax.f32 %v715, 0.0
  %v762 = vmax.f32 %v720, 0.0
  %v763 = vmax.f32 %v725, 0.0
  %v764 = vmax.f32 %v730, 0.0
  %v765 = vld [vmem:[%s5] sm:$0xf]
  %v766 = vld [vmem:[%s5 + $0x4] sm:$0xf]
  %v767 = vld [vmem:[%s5 + $0x8] sm:$0xf]
  %v768 = vld [vmem:[%s5 + $0xc] sm:$0xf]
  %v769 = vunpack.c.l.bf16 %v765
  %v770 = vunpack.c.l.bf16 %v766
  %v771 = vunpack.c.l.bf16 %v767
  %v772 = vunpack.c.l.bf16 %v768
  %v773 = vld [vmem:[%s6] sm:$0x1]
  %v775 = vlaneseq
  %v776 = vshrl.u32 %v775, 7
  %v777 = vsub.s32 0, %v776
  %v778 = vrot.slane %v773, %v777
  %v781 = vsel %vm411, %v733, 0
  %v784 = vsel %vm411, %v734, 0
  %v787 = vsel %vm411, %v735, 0
  %v790 = vsel %vm411, %v736, 0
  %v793 = vsel %vm411, %v737, 0
  %v796 = vsel %vm411, %v738, 0
  %v799 = vsel %vm411, %v739, 0
  %v802 = vsel %vm411, %v740, 0
  %v805 = vsel %vm411, %v741, 0
  %v808 = vsel %vm411, %v742, 0
  %v811 = vsel %vm411, %v743, 0
  %v814 = vsel %vm411, %v744, 0
  %v817 = vsel %vm411, %v745, 0
  %v820 = vsel %vm411, %v746, 0
  %v823 = vsel %vm411, %v747, 0
  %v826 = vsel %vm411, %v748, 0
  %v829 = vsel %vm411, %v749, 0
  %v832 = vsel %vm411, %v750, 0
  %v835 = vsel %vm411, %v751, 0
  %v838 = vsel %vm411, %v752, 0
  %v841 = vsel %vm411, %v753, 0
  %v844 = vsel %vm411, %v754, 0
  %v847 = vsel %vm411, %v755, 0
  %v850 = vsel %vm411, %v756, 0
  %v853 = vsel %vm411, %v757, 0
  %v856 = vsel %vm411, %v758, 0
  %v859 = vsel %vm411, %v759, 0
  %v862 = vsel %vm411, %v760, 0
  %v865 = vsel %vm411, %v761, 0
  %v868 = vsel %vm411, %v762, 0
  %v871 = vsel %vm411, %v763, 0
  %v874 = vsel %vm411, %v764, 0
  %876 = vmatprep.subr.mxu0 0.0
  %877 = vmatpush1.msra.mxu0 0.0
  %878 = vmatprep.subr.mxu0 0.0
  %879 = vmatpush1.msra.mxu0 0.0
  %880 = vmatprep.subr.mxu0 0.0
  %881 = vmatpush1.msra.mxu0 0.0
  %882 = vmatprep.subr.mxu0 0.0
  %883 = vmatpush1.msra.mxu0 0.0
  %884 = vmatprep.subr.mxu0 0.0
  %885 = vmatpush1.msra.mxu0 0.0
  %886 = vmatprep.subr.mxu0 0.0
  %887 = vmatpush1.msra.mxu0 0.0
  %888 = vmatprep.subr.mxu0 0.0
  %889 = vmatpush1.msra.mxu0 0.0
  %890 = vmatprep.subr.mxu0 0.0
  %891 = vmatpush1.msra.mxu0 0.0
  %892 = vmatprep.subr.mxu0 0.0
  %893 = vmatpush1.msra.mxu0 0.0
  %894 = vmatprep.subr.mxu0 0.0
  %895 = vmatpush1.msra.mxu0 0.0
  %896 = vmatprep.subr.mxu0 0.0
  %897 = vmatpush1.msra.mxu0 0.0
  %898 = vmatprep.subr.mxu0 0.0
  %899 = vmatpush1.msra.mxu0 0.0
  %900 = vmatprep.subr.mxu0 0.0
  %901 = vmatpush1.msra.mxu0 %v772
  %902 = vmatprep.subr.mxu0 0.0
  %903 = vmatpush1.msra.mxu0 %v771
  %904 = vmatprep.subr.mxu0 0.0
  %905 = vmatpush1.msra.mxu0 %v770
  %906 = vmatprep.subr.mxu0 0.0
  %907 = vmatpush1.msra.mxu0 %v769
  %908 = vmatprep.subr.mxu0 0.0
  %909 = vmatpush2.msra.mxu0 0.0
  %910 = vmatprep.subr.mxu0 0.0
  %911 = vmatpush2.msra.mxu0 0.0
  %912 = vmatprep.subr.mxu0 0.0
  %913 = vmatpush2.msra.mxu0 0.0
  %914 = vmatprep.subr.mxu0 0.0
  %915 = vmatpush2.msra.mxu0 0.0
  %916 = vmatprep.subr.mxu0 0.0
  %917 = vmatpush2.msra.mxu0 0.0
  %918 = vmatprep.subr.mxu0 0.0
  %919 = vmatpush2.msra.mxu0 0.0
  %920 = vmatprep.subr.mxu0 0.0
  %921 = vmatpush2.msra.mxu0 0.0
  %922 = vmatprep.subr.mxu0 0.0
  %923 = vmatpush2.msra.mxu0 0.0
  %924 = vmatprep.subr.mxu0 0.0
  %925 = vmatpush2.msra.mxu0 0.0
  %926 = vmatprep.subr.mxu0 0.0
  %927 = vmatpush2.msra.mxu0 0.0
  %928 = vmatprep.subr.mxu0 0.0
  %929 = vmatpush2.msra.mxu0 0.0
  %930 = vmatprep.subr.mxu0 0.0
  %931 = vmatpush2.msra.mxu0 0.0
  %932 = vmatprep.subr.mxu0 0.0
  %933 = vmatpush2.msra.mxu0 0.0
  %934 = vmatprep.subr.mxu0 0.0
  %935 = vmatpush2.msra.mxu0 0.0
  %936 = vmatprep.subr.mxu0 0.0
  %937 = vmatpush2.msra.mxu0 0.0
  %938 = vmatprep.subr.mxu0 0.0
  %939 = vmatpush2.msra.mxu0 0.0
  %940 = vmatprep.mubr.f32.mxu0 0.0
  %941 = vmatmul.mubr.f32.gmra.mxu0 %v781
  %v942 = vpop.f32.mrf.mxu0
  %v943 = vadd.f32 %v778, %v942
  %v944 = vpop.f32.mrf.mxu0
  %945 = vmatprep.mubr.f32.mxu0 0.0
  %946 = vmatmul.mubr.f32.gmra.mxu0 %v784
  %v947 = vpop.f32.mrf.mxu0
  %v948 = vadd.f32 %v778, %v947
  %v949 = vpop.f32.mrf.mxu0
  %950 = vmatprep.mubr.f32.mxu0 0.0
  %951 = vmatmul.mubr.f32.gmra.mxu0 %v787
  %v952 = vpop.f32.mrf.mxu0
  %v953 = vadd.f32 %v778, %v952
  %v954 = vpop.f32.mrf.mxu0
  %955 = vmatprep.mubr.f32.mxu0 0.0
  %956 = vmatmul.mubr.f32.gmra.mxu0 %v790
  %v957 = vpop.f32.mrf.mxu0
  %v958 = vadd.f32 %v778, %v957
  %v959 = vpop.f32.mrf.mxu0
  %960 = vmatprep.mubr.f32.mxu0 0.0
  %961 = vmatmul.mubr.f32.gmra.mxu0 %v793
  %v962 = vpop.f32.mrf.mxu0
  %v963 = vadd.f32 %v778, %v962
  %v964 = vpop.f32.mrf.mxu0
  %965 = vmatprep.mubr.f32.mxu0 0.0
  %966 = vmatmul.mubr.f32.gmra.mxu0 %v796
  %v967 = vpop.f32.mrf.mxu0
  %v968 = vadd.f32 %v778, %v967
  %v969 = vpop.f32.mrf.mxu0
  %970 = vmatprep.mubr.f32.mxu0 0.0
  %971 = vmatmul.mubr.f32.gmra.mxu0 %v799
  %v972 = vpop.f32.mrf.mxu0
  %v973 = vadd.f32 %v778, %v972
  %v974 = vpop.f32.mrf.mxu0
  %975 = vmatprep.mubr.f32.mxu0 0.0
  %976 = vmatmul.mubr.f32.gmra.mxu0 %v802
  %v977 = vpop.f32.mrf.mxu0
  %v978 = vadd.f32 %v778, %v977
  %v979 = vpop.f32.mrf.mxu0
  %980 = vmatprep.mubr.f32.mxu0 0.0
  %981 = vmatmul.mubr.f32.gmra.mxu0 %v805
  %v982 = vpop.f32.mrf.mxu0
  %v983 = vadd.f32 %v778, %v982
  %v984 = vpop.f32.mrf.mxu0
  %985 = vmatprep.mubr.f32.mxu0 0.0
  %986 = vmatmul.mubr.f32.gmra.mxu0 %v808
  %v987 = vpop.f32.mrf.mxu0
  %v988 = vadd.f32 %v778, %v987
  %v989 = vpop.f32.mrf.mxu0
  %990 = vmatprep.mubr.f32.mxu0 0.0
  %991 = vmatmul.mubr.f32.gmra.mxu0 %v811
  %v992 = vpop.f32.mrf.mxu0
  %v993 = vadd.f32 %v778, %v992
  %v994 = vpop.f32.mrf.mxu0
  %995 = vmatprep.mubr.f32.mxu0 0.0
  %996 = vmatmul.mubr.f32.gmra.mxu0 %v814
  %v997 = vpop.f32.mrf.mxu0
  %v998 = vadd.f32 %v778, %v997
  %v999 = vpop.f32.mrf.mxu0
  %1000 = vmatprep.mubr.f32.mxu0 0.0
  %1001 = vmatmul.mubr.f32.gmra.mxu0 %v817
  %v1002 = vpop.f32.mrf.mxu0
  %v1003 = vadd.f32 %v778, %v1002
  %v1004 = vpop.f32.mrf.mxu0
  %1005 = vmatprep.mubr.f32.mxu0 0.0
  %1006 = vmatmul.mubr.f32.gmra.mxu0 %v820
  %v1007 = vpop.f32.mrf.mxu0
  %v1008 = vadd.f32 %v778, %v1007
  %v1009 = vpop.f32.mrf.mxu0
  %1010 = vmatprep.mubr.f32.mxu0 0.0
  %1011 = vmatmul.mubr.f32.gmra.mxu0 %v823
  %v1012 = vpop.f32.mrf.mxu0
  %v1013 = vadd.f32 %v778, %v1012
  %v1014 = vpop.f32.mrf.mxu0
  %1015 = vmatprep.mubr.f32.mxu0 0.0
  %1016 = vmatmul.mubr.f32.gmra.mxu0 %v826
  %v1017 = vpop.f32.mrf.mxu0
  %v1018 = vadd.f32 %v778, %v1017
  %v1019 = vpop.f32.mrf.mxu0
  %1020 = vmatprep.mubr.f32.mxu0 0.0
  %1021 = vmatmul.mubr.f32.gmra.mxu0 %v829
  %v1022 = vpop.f32.mrf.mxu0
  %v1023 = vadd.f32 %v778, %v1022
  %v1024 = vpop.f32.mrf.mxu0
  %1025 = vmatprep.mubr.f32.mxu0 0.0
  %1026 = vmatmul.mubr.f32.gmra.mxu0 %v832
  %v1027 = vpop.f32.mrf.mxu0
  %v1028 = vadd.f32 %v778, %v1027
  %v1029 = vpop.f32.mrf.mxu0
  %1030 = vmatprep.mubr.f32.mxu0 0.0
  %1031 = vmatmul.mubr.f32.gmra.mxu0 %v835
  %v1032 = vpop.f32.mrf.mxu0
  %v1033 = vadd.f32 %v778, %v1032
  %v1034 = vpop.f32.mrf.mxu0
  %1035 = vmatprep.mubr.f32.mxu0 0.0
  %1036 = vmatmul.mubr.f32.gmra.mxu0 %v838
  %v1037 = vpop.f32.mrf.mxu0
  %v1038 = vadd.f32 %v778, %v1037
  %v1039 = vpop.f32.mrf.mxu0
  %1040 = vmatprep.mubr.f32.mxu0 0.0
  %1041 = vmatmul.mubr.f32.gmra.mxu0 %v841
  %v1042 = vpop.f32.mrf.mxu0
  %v1043 = vadd.f32 %v778, %v1042
  %v1044 = vpop.f32.mrf.mxu0
  %1045 = vmatprep.mubr.f32.mxu0 0.0
  %1046 = vmatmul.mubr.f32.gmra.mxu0 %v844
  %v1047 = vpop.f32.mrf.mxu0
  %v1048 = vadd.f32 %v778, %v1047
  %v1049 = vpop.f32.mrf.mxu0
  %1050 = vmatprep.mubr.f32.mxu0 0.0
  %1051 = vmatmul.mubr.f32.gmra.mxu0 %v847
  %v1052 = vpop.f32.mrf.mxu0
  %v1053 = vadd.f32 %v778, %v1052
  %v1054 = vpop.f32.mrf.mxu0
  %1055 = vmatprep.mubr.f32.mxu0 0.0
  %1056 = vmatmul.mubr.f32.gmra.mxu0 %v850
  %v1057 = vpop.f32.mrf.mxu0
  %v1058 = vadd.f32 %v778, %v1057
  %v1059 = vpop.f32.mrf.mxu0
  %1060 = vmatprep.mubr.f32.mxu0 0.0
  %1061 = vmatmul.mubr.f32.gmra.mxu0 %v853
  %v1062 = vpop.f32.mrf.mxu0
  %v1063 = vadd.f32 %v778, %v1062
  %v1064 = vpop.f32.mrf.mxu0
  %1065 = vmatprep.mubr.f32.mxu0 0.0
  %1066 = vmatmul.mubr.f32.gmra.mxu0 %v856
  %v1067 = vpop.f32.mrf.mxu0
  %v1068 = vadd.f32 %v778, %v1067
  %v1069 = vpop.f32.mrf.mxu0
  %1070 = vmatprep.mubr.f32.mxu0 0.0
  %1071 = vmatmul.mubr.f32.gmra.mxu0 %v859
  %v1072 = vpop.f32.mrf.mxu0
  %v1073 = vadd.f32 %v778, %v1072
  %v1074 = vpop.f32.mrf.mxu0
  %1075 = vmatprep.mubr.f32.mxu0 0.0
  %1076 = vmatmul.mubr.f32.gmra.mxu0 %v862
  %v1077 = vpop.f32.mrf.mxu0
  %v1078 = vadd.f32 %v778, %v1077
  %v1079 = vpop.f32.mrf.mxu0
  %1080 = vmatprep.mubr.f32.mxu0 0.0
  %1081 = vmatmul.mubr.f32.gmra.mxu0 %v865
  %v1082 = vpop.f32.mrf.mxu0
  %v1083 = vadd.f32 %v778, %v1082
  %v1084 = vpop.f32.mrf.mxu0
  %1085 = vmatprep.mubr.f32.mxu0 0.0
  %1086 = vmatmul.mubr.f32.gmra.mxu0 %v868
  %v1087 = vpop.f32.mrf.mxu0
  %v1088 = vadd.f32 %v778, %v1087
  %v1089 = vpop.f32.mrf.mxu0
  %1090 = vmatprep.mubr.f32.mxu0 0.0
  %1091 = vmatmul.mubr.f32.gmra.mxu0 %v871
  %v1092 = vpop.f32.mrf.mxu0
  %v1093 = vadd.f32 %v778, %v1092
  %v1094 = vpop.f32.mrf.mxu0
  %1095 = vmatprep.mubr.f32.mxu0 0.0
  %1096 = vmatmul.mubr.f32.gmra.mxu0 %v874
  %v1097 = vpop.f32.mrf.mxu0
  %v1098 = vadd.f32 %v778, %v1097
  %v1099 = vpop.f32.mrf.mxu0
  %1100 = vdwg.mxu0
  %v1101 = vtanh.pop %v943
  %v1102 = vtanh.pop %v948
  %v1103 = vtanh.pop %v953
  %v1104 = vtanh.pop %v958
  %v1105 = vtanh.pop %v963
  %v1106 = vtanh.pop %v968
  %v1107 = vtanh.pop %v973
  %v1108 = vtanh.pop %v978
  %v1109 = vtanh.pop %v983
  %v1110 = vtanh.pop %v988
  %v1111 = vtanh.pop %v993
  %v1112 = vtanh.pop %v998
  %v1113 = vtanh.pop %v1003
  %v1114 = vtanh.pop %v1008
  %v1115 = vtanh.pop %v1013
  %v1116 = vtanh.pop %v1018
  %v1117 = vtanh.pop %v1023
  %v1118 = vtanh.pop %v1028
  %v1119 = vtanh.pop %v1033
  %v1120 = vtanh.pop %v1038
  %v1121 = vtanh.pop %v1043
  %v1122 = vtanh.pop %v1048
  %v1123 = vtanh.pop %v1053
  %v1124 = vtanh.pop %v1058
  %v1125 = vtanh.pop %v1063
  %v1126 = vtanh.pop %v1068
  %v1127 = vtanh.pop %v1073
  %v1128 = vtanh.pop %v1078
  %v1129 = vtanh.pop %v1083
  %v1130 = vtanh.pop %v1088
  %v1131 = vtanh.pop %v1093
  %v1132 = vtanh.pop %v1098
  %vm1133 = vcmask 64512
  %1134 = vst.msk [vmem:[%s7] sm:$0xff] %vm1133, %v1101
  %1135 = vst.msk [vmem:[%s7 + $0x8] sm:$0xff] %vm1133, %v1102
  %1136 = vst.msk [vmem:[%s7 + $0x10] sm:$0xff] %vm1133, %v1103
  %1137 = vst.msk [vmem:[%s7 + $0x18] sm:$0xff] %vm1133, %v1104
  %1138 = vst.msk [vmem:[%s7 + $0x20] sm:$0xff] %vm1133, %v1105
  %1139 = vst.msk [vmem:[%s7 + $0x28] sm:$0xff] %vm1133, %v1106
  %1140 = vst.msk [vmem:[%s7 + $0x30] sm:$0xff] %vm1133, %v1107
  %1141 = vst.msk [vmem:[%s7 + $0x38] sm:$0xff] %vm1133, %v1108
  %1142 = vst.msk [vmem:[%s7 + $0x40] sm:$0xff] %vm1133, %v1109
  %1143 = vst.msk [vmem:[%s7 + $0x48] sm:$0xff] %vm1133, %v1110
  %1144 = vst.msk [vmem:[%s7 + $0x50] sm:$0xff] %vm1133, %v1111
  %1145 = vst.msk [vmem:[%s7 + $0x58] sm:$0xff] %vm1133, %v1112
  %1146 = vst.msk [vmem:[%s7 + $0x60] sm:$0xff] %vm1133, %v1113
  %1147 = vst.msk [vmem:[%s7 + $0x68] sm:$0xff] %vm1133, %v1114
  %1148 = vst.msk [vmem:[%s7 + $0x70] sm:$0xff] %vm1133, %v1115
  %1149 = vst.msk [vmem:[%s7 + $0x78] sm:$0xff] %vm1133, %v1116
  %1150 = vst.msk [vmem:[%s7 + $0x80] sm:$0xff] %vm1133, %v1117
  %1151 = vst.msk [vmem:[%s7 + $0x88] sm:$0xff] %vm1133, %v1118
  %1152 = vst.msk [vmem:[%s7 + $0x90] sm:$0xff] %vm1133, %v1119
  %1153 = vst.msk [vmem:[%s7 + $0x98] sm:$0xff] %vm1133, %v1120
  %1154 = vst.msk [vmem:[%s7 + $0xa0] sm:$0xff] %vm1133, %v1121
  %1155 = vst.msk [vmem:[%s7 + $0xa8] sm:$0xff] %vm1133, %v1122
  %1156 = vst.msk [vmem:[%s7 + $0xb0] sm:$0xff] %vm1133, %v1123
  %1157 = vst.msk [vmem:[%s7 + $0xb8] sm:$0xff] %vm1133, %v1124
  %1158 = vst.msk [vmem:[%s7 + $0xc0] sm:$0xff] %vm1133, %v1125
  %1159 = vst.msk [vmem:[%s7 + $0xc8] sm:$0xff] %vm1133, %v1126
  %1160 = vst.msk [vmem:[%s7 + $0xd0] sm:$0xff] %vm1133, %v1127
  %1161 = vst.msk [vmem:[%s7 + $0xd8] sm:$0xff] %vm1133, %v1128
  %1162 = vst.msk [vmem:[%s7 + $0xe0] sm:$0xff] %vm1133, %v1129
  %1163 = vst.msk [vmem:[%s7 + $0xe8] sm:$0xff] %vm1133, %v1130
  %1164 = vst.msk [vmem:[%s7 + $0xf0] sm:$0xff] %vm1133, %v1131
  %1165 = vst.msk [vmem:[%s7 + $0xf8] sm:$0xff] %vm1133, %v1132
  // Predicated region
  $region30: #{tpu_custom_call.1} parent=0 // pred_check
    _
  $region31: #{tpu_custom_call.1} parent=0 // pred_check_branch
    %1167 = sbr.rel (0) target = $region33
  $region32: #{tpu_custom_call.1} parent=0 // pred_region
    _
  $region33: #{tpu_custom_call.1} parent=0 // pred_fallthru
    _
  // Predicated region
  $region34: #{tpu_custom_call.1} parent=0 // pred_check
    _
  $region35: #{tpu_custom_call.1} parent=0 // pred_check_branch
    %1169 = sbr.rel (0) target = $region37
  $region36: #{tpu_custom_call.1} parent=0 // pred_region
    _
  $region37: #{tpu_custom_call.1} parent=0 // pred_fallthru
    _

</llo_original>
